<compile_context>
chip_gen: v6e
topology: v6e:2x2x1
jax: 0.10.0
libtpu: 0.0.40
codegen_flags: <defaults>
</compile_context>

<pallas_src>
import functools

import numpy as np
import jax
import jax.numpy as jnp
from jax.experimental import pallas as pl
from jax.experimental.pallas import tpu as pltpu

_LANE = 128
_SUBLANE = 8


def _round_up(v, m):
    return -(-v // m) * m


def _cdiv(a, b):
    return -(-a // b)


def _dice_sums_kernel(x_ref, y_ref, tp_ref, a_ref, b_ref, *, square):
    """Accumulates lane-wise partial sums over the spatial reduction axis.

    square=False: tp += sum_g(x*y), a += sum_g(x),        b += sum_g(y)
    square=True : tp += sum_g((xy)^2), a += sum_g((x(1-y))^2), b += sum_g(((1-x)y)^2)
    where sum_g folds the 128-lane groups of the block together (VALU adds).
    """
    @pl.when(pl.program_id(2) == 0)
    def _init():
        tp_ref[...] = jnp.zeros_like(tp_ref)
        a_ref[...] = jnp.zeros_like(a_ref)
        b_ref[...] = jnp.zeros_like(b_ref)

    rb, cb = x_ref.shape
    tp_acc = jnp.zeros((rb, _LANE), jnp.float32)
    a_acc = jnp.zeros((rb, _LANE), jnp.float32)
    b_acc = jnp.zeros((rb, _LANE), jnp.float32)

    # Static unroll over lane groups; slices are lane-aligned whole-vreg views.
    for j in range(cb // _LANE):
        sl = pl.ds(j * _LANE, _LANE)
        x = x_ref[:, sl].astype(jnp.float32)
        y = y_ref[:, sl].astype(jnp.float32)
        if square:
            tp = x * y
            fp = x * (1.0 - y)
            fn = (1.0 - x) * y
            tp_acc = tp_acc + tp * tp
            a_acc = a_acc + fp * fp
            b_acc = b_acc + fn * fn
        else:
            tp_acc = tp_acc + x * y
            a_acc = a_acc + x
            b_acc = b_acc + y

    tp_ref[...] += tp_acc
    a_ref[...] += a_acc
    b_ref[...] += b_acc


def _choose_tiles(R, S, x_item, y_item):
    """Pick (rb, cb, R_pad, S_pad, n_par, n_red) from a VMEM budget."""
    # Row tile (sublane axis): multiple of 8; give the parallel row axis >= 2
    # blocks whenever R allows (v7x megacore).
    R8 = _round_up(R, _SUBLANE)
    if R8 <= _SUBLANE:
        rb = R8
    else:
        rb = min(128, _round_up(R8 // 2, _SUBLANE))
    R_pad = _round_up(R8, rb)

    # Spatial tile (lane axis): as large as the double-buffered input working
    # set allows (8 MiB budget -> plenty of headroom under the 32 MiB scoped
    # VMEM limit and v7x's 64 MiB physical VMEM), capped at 64 lane-groups so
    # the in-kernel unroll stays short.
    budget = 8 * 1024 * 1024
    per_group = 2 * rb * _LANE * (x_item + y_item)      # 2 pipeline buffers
    max_groups = max(1, min(64, budget // per_group))

    G = _round_up(S, _LANE) // _LANE                    # total lane groups
    nk = _cdiv(G, max_groups)                           # spatial blocks
    g = _cdiv(G, nk)                                    # lane groups per block
    cb = g * _LANE
    if nk > 1 and nk % 2 == 1:
        nk += 1                                         # keep the parallel split even
    n_par = 2 if nk >= 2 else 1
    n_red = nk // n_par
    S_pad = nk * cb
    return rb, cb, R_pad, S_pad, n_par, n_red


def _dice_partial_sums(x2, y2, square):
    """x2, y2: (R, S).  Returns per-row f32 sums (see _dice_sums_kernel)."""
    R, S = x2.shape
    rb, cb, R_pad, S_pad, n_par, n_red = _choose_tiles(
        R, S, x2.dtype.itemsize, y2.dtype.itemsize)

    # Zero padding is sum-neutral for every accumulated quantity (both x and y
    # are padded with zeros), so lane/row alignment never changes the result.
    if (R_pad, S_pad) != (R, S):
        x2 = jnp.pad(x2, ((0, R_pad - R), (0, S_pad - S)))
        y2 = jnp.pad(y2, ((0, R_pad - R), (0, S_pad - S)))

    grid = (R_pad // rb, n_par, n_red)

    def in_map(i, p, r):
        return (i, p * n_red + r)

    def out_map(i, p, r):
        return (i, p)

    out_sds = jax.ShapeDtypeStruct((R_pad, n_par * _LANE), jnp.float32)
    kernel = functools.partial(_dice_sums_kernel, square=square)

    tp, a, b = pl.pallas_call(
        kernel,
        out_shape=(out_sds, out_sds, out_sds),
        grid_spec=pltpu.PrefetchScalarGridSpec(
            num_scalar_prefetch=0,
            grid=grid,
            in_specs=[
                pl.BlockSpec((rb, cb), in_map),
                pl.BlockSpec((rb, cb), in_map),
            ],
            out_specs=[
                pl.BlockSpec((rb, _LANE), out_map),
                pl.BlockSpec((rb, _LANE), out_map),
                pl.BlockSpec((rb, _LANE), out_map),
            ],
        ),
        compiler_params=pltpu.CompilerParams(
            dimension_semantics=("parallel", "parallel", "arbitrary"),
            vmem_limit_bytes=32 * 1024 * 1024),
    )(x2, y2)

    # Tiny epilogue: one cross-lane reduce per output, strip row padding.
    tp = jnp.sum(tp, axis=-1)[:R]
    a = jnp.sum(a, axis=-1)[:R]
    b = jnp.sum(b, axis=-1)[:R]
    return tp, a, b


def soft_dice_loss(x, y, loss_mask=None, apply_nonlin=None, batch_dice=False,
                   do_bg=True, smooth=1.0, square=False):
    """Matches SoftDiceLoss(apply_nonlin, batch_dice, do_bg, smooth, square).forward."""
    if apply_nonlin is not None:
        # TODO(synk): fusing the nonlinearity (e.g. softmax over channels) into
        # the kernel would avoid one full HBM round-trip of the activation.
        x = apply_nonlin(x)

    shp_x = x.shape
    # gt handling (label map -> one-hot), mirrors get_tp_fp_fn.
    if y.ndim != x.ndim:
        y = y.reshape(y.shape[0], 1, *y.shape[1:])
    if y.shape != x.shape:
        # bf16 is exact for {0, 1} and halves the HBM read of the target stream.
        # TODO(synk): passing the raw label map and synthesizing the one-hot
        # against the channel index inside the kernel would cut traffic further.
        labels = y[:, 0].astype(jnp.int32)
        y = jnp.moveaxis(jax.nn.one_hot(labels, shp_x[1], dtype=jnp.bfloat16), -1, 1)

    if loss_mask is not None:
        # Mask is documented as binary (1 valid / 0 invalid).  For binary m,
        # pre-multiplying BOTH operands reproduces the masked tp/fp/fn exactly
        # (including the `square` variant), so the kernel needs no third stream.
        m = loss_mask.reshape(shp_x[0], 1, *shp_x[2:])
        x = x * m.astype(x.dtype)
        y = y * m.astype(y.dtype)

    B, C = int(shp_x[0]), int(shp_x[1])
    S = int(np.prod(shp_x[2:]))
    x2 = x.reshape(B * C, S)            # native dtype; kernel accumulates in f32
    y2 = y.reshape(B * C, S)

    tp, a, b = _dice_partial_sums(x2, y2, square)
    tp = tp.reshape(B, C)
    a = a.reshape(B, C)
    b = b.reshape(B, C)
    if square:
        fp, fn = a, b
    else:
        # a = sum(x), b = sum(y):  fp = sum(x(1-y)) = a - tp ; fn = sum((1-x)y) = b - tp
        fp = a - tp
        fn = b - tp

    if batch_dice:
        tp = tp.sum(axis=0)
        fp = fp.sum(axis=0)
        fn = fn.sum(axis=0)

    dc = (2.0 * tp + smooth) / (2.0 * tp + fp + fn + smooth)
    if not do_bg:
        dc = dc[1:] if batch_dice else dc[:, 1:]
    return -jnp.mean(dc)


def _reference_soft_dice(x, y_onehot, smooth=1.0, square=False, batch_dice=False,
                         do_bg=True):
    x = x.astype(jnp.float32)
    y = y_onehot.astype(jnp.float32)
    axes = tuple(range(2, x.ndim))
    tp = x * y
    fp = x * (1.0 - y)
    fn = (1.0 - x) * y
    if square:
        tp, fp, fn = tp * tp, fp * fp, fn * fn
    tp = tp.sum(axes)
    fp = fp.sum(axes)
    fn = fn.sum(axes)
    if batch_dice:
        tp, fp, fn = tp.sum(0), fp.sum(0), fn.sum(0)
    dc = (2.0 * tp + smooth) / (2.0 * tp + fp + fn + smooth)
    if not do_bg:
        dc = dc[1:] if batch_dice else dc[:, 1:]
    return -jnp.mean(dc)


if __name__ == "__main__":
    key = jax.random.PRNGKey(0)
    kx, ky = jax.random.split(key)

    B, C, H, W = 2, 4, 16, 16
    # "net_output": probabilities in [0, 1] (e.g. post-softmax)
    logits = jax.random.normal(kx, (B, C, H, W), dtype=jnp.float32)
    x = jax.nn.softmax(logits, axis=1)
    # ground truth: random label map and its one-hot encoding
    labels = jax.random.randint(ky, (B, H, W), 0, C)
    y_onehot = jnp.moveaxis(jax.nn.one_hot(labels, C, dtype=jnp.float32), -1, 1)

    # default SoftDiceLoss() config, one-hot target
    loss = jax.block_until_ready(soft_dice_loss(x, y_onehot))
    ref = jax.block_until_ready(_reference_soft_dice(x, y_onehot))
    np.testing.assert_allclose(np.asarray(loss), np.asarray(ref),
                               rtol=1e-5, atol=1e-5)

    # square=True + batch_dice + label-map target (exercises the other branch)
    loss_sq = jax.block_until_ready(
        soft_dice_loss(x, labels.astype(jnp.float32), batch_dice=True, square=True))
    ref_sq = jax.block_until_ready(
        _reference_soft_dice(x, y_onehot, square=True, batch_dice=True))
    np.testing.assert_allclose(np.asarray(loss_sq), np.asarray(ref_sq),
                               rtol=1e-5, atol=1e-5)

    print("KERNEL_OK")
</pallas_src>

<mosaic_0001>
module attributes {stable_mosaic.version = 11 : i64} {
  func.func @_dice_sums_kernel(%arg0: i32, %arg1: i32, %arg2: i32, %arg3: memref<8x256xf32, #tpu.memory_space<vmem>>, %arg4: memref<8x256xf32, #tpu.memory_space<vmem>>, %arg5: memref<8x128xf32, #tpu.memory_space<vmem>>, %arg6: memref<8x128xf32, #tpu.memory_space<vmem>>, %arg7: memref<8x128xf32, #tpu.memory_space<vmem>>) attributes {dimension_semantics = [#tpu.dimension_semantics<parallel>, #tpu.dimension_semantics<parallel>, #tpu.dimension_semantics<arbitrary>], iteration_bounds = array<i64: 1, 1, 1>, scalar_prefetch = 0 : i64, scratch_operands = 0 : i64, tpu.core_type = #tpu.core_type<tc>, window_params = [{transform_indices = @transform_0, window_bounds = array<i64: 8, 256>}, {transform_indices = @transform_1, window_bounds = array<i64: 8, 256>}, {transform_indices = @transform_2, window_bounds = array<i64: 8, 128>}, {transform_indices = @transform_3, window_bounds = array<i64: 8, 128>}, {transform_indices = @transform_4, window_bounds = array<i64: 8, 128>}]} {
    %c0_i32 = arith.constant 0 : i32
    %0 = arith.cmpi eq, %arg2, %c0_i32 : i32
    %1 = arith.extui %0 : i1 to i32
    %c0_i32_0 = arith.constant 0 : i32
    %2 = arith.cmpi ne, %1, %c0_i32_0 : i32
    scf.if %2 {
      %cst_21 = arith.constant 0.000000e+00 : f32
      %27 = vector.broadcast %cst_21 : f32 to vector<8x128xf32>
      %c0_22 = arith.constant 0 : index
      %c0_23 = arith.constant 0 : index
      %28 = vector.load %arg5[%c0_22, %c0_23] : memref<8x128xf32, #tpu.memory_space<vmem>>, vector<8x128xf32>
      tpu.vector_store %arg5[%c0_22, %c0_23], %27 {strides = array<i32>} : memref<8x128xf32, #tpu.memory_space<vmem>>, vector<8x128xf32>,
      %cst_24 = arith.constant 0.000000e+00 : f32
      %29 = vector.broadcast %cst_24 : f32 to vector<8x128xf32>
      %c0_25 = arith.constant 0 : index
      %c0_26 = arith.constant 0 : index
      %30 = vector.load %arg6[%c0_25, %c0_26] : memref<8x128xf32, #tpu.memory_space<vmem>>, vector<8x128xf32>
      tpu.vector_store %arg6[%c0_25, %c0_26], %29 {strides = array<i32>} : memref<8x128xf32, #tpu.memory_space<vmem>>, vector<8x128xf32>,
      %cst_27 = arith.constant 0.000000e+00 : f32
      %31 = vector.broadcast %cst_27 : f32 to vector<8x128xf32>
      %c0_28 = arith.constant 0 : index
      %c0_29 = arith.constant 0 : index
      %32 = vector.load %arg7[%c0_28, %c0_29] : memref<8x128xf32, #tpu.memory_space<vmem>>, vector<8x128xf32>
      tpu.vector_store %arg7[%c0_28, %c0_29], %31 {strides = array<i32>} : memref<8x128xf32, #tpu.memory_space<vmem>>, vector<8x128xf32>,
    } else {
    }
    %cst = arith.constant 0.000000e+00 : f32
    %3 = vector.broadcast %cst : f32 to vector<8x128xf32>
    %cst_1 = arith.constant 0.000000e+00 : f32
    %4 = vector.broadcast %cst_1 : f32 to vector<8x128xf32>
    %cst_2 = arith.constant 0.000000e+00 : f32
    %5 = vector.broadcast %cst_2 : f32 to vector<8x128xf32>
    %c0 = arith.constant 0 : index
    %c0_3 = arith.constant 0 : index
    %6 = vector.load %arg3[%c0, %c0_3] : memref<8x256xf32, #tpu.memory_space<vmem>>, vector<8x128xf32>
    %c0_4 = arith.constant 0 : index
    %c0_5 = arith.constant 0 : index
    %7 = vector.load %arg4[%c0_4, %c0_5] : memref<8x256xf32, #tpu.memory_space<vmem>>, vector<8x128xf32>
    %8 = arith.mulf %6, %7 : vector<8x128xf32>
    %9 = arith.addf %3, %8 : vector<8x128xf32>
    %10 = arith.addf %4, %6 : vector<8x128xf32>
    %11 = arith.addf %5, %7 : vector<8x128xf32>
    %c0_6 = arith.constant 0 : index
    %c128 = arith.constant 128 : index
    %12 = vector.load %arg3[%c0_6, %c128] : memref<8x256xf32, #tpu.memory_space<vmem>>, vector<8x128xf32>
    %c0_7 = arith.constant 0 : index
    %c128_8 = arith.constant 128 : index
    %13 = vector.load %arg4[%c0_7, %c128_8] : memref<8x256xf32, #tpu.memory_space<vmem>>, vector<8x128xf32>
    %14 = arith.mulf %12, %13 : vector<8x128xf32>
    %15 = arith.addf %9, %14 : vector<8x128xf32>
    %16 = arith.addf %10, %12 : vector<8x128xf32>
    %17 = arith.addf %11, %13 : vector<8x128xf32>
    %c0_9 = arith.constant 0 : index
    %c0_10 = arith.constant 0 : index
    %18 = vector.load %arg5[%c0_9, %c0_10] : memref<8x128xf32, #tpu.memory_space<vmem>>, vector<8x128xf32>
    %19 = arith.addf %18, %15 : vector<8x128xf32>
    %c0_11 = arith.constant 0 : index
    %c0_12 = arith.constant 0 : index
    %20 = vector.load %arg5[%c0_11, %c0_12] : memref<8x128xf32, #tpu.memory_space<vmem>>, vector<8x128xf32>
    tpu.vector_store %arg5[%c0_11, %c0_12], %19 {strides = array<i32>} : memref<8x128xf32, #tpu.memory_space<vmem>>, vector<8x128xf32>,
    %c0_13 = arith.constant 0 : index
    %c0_14 = arith.constant 0 : index
    %21 = vector.load %arg6[%c0_13, %c0_14] : memref<8x128xf32, #tpu.memory_space<vmem>>, vector<8x128xf32>
    %22 = arith.addf %21, %16 : vector<8x128xf32>
    %c0_15 = arith.constant 0 : index
    %c0_16 = arith.constant 0 : index
    %23 = vector.load %arg6[%c0_15, %c0_16] : memref<8x128xf32, #tpu.memory_space<vmem>>, vector<8x128xf32>
    tpu.vector_store %arg6[%c0_15, %c0_16], %22 {strides = array<i32>} : memref<8x128xf32, #tpu.memory_space<vmem>>, vector<8x128xf32>,
    %c0_17 = arith.constant 0 : index
    %c0_18 = arith.constant 0 : index
    %24 = vector.load %arg7[%c0_17, %c0_18] : memref<8x128xf32, #tpu.memory_space<vmem>>, vector<8x128xf32>
    %25 = arith.addf %24, %17 : vector<8x128xf32>
    %c0_19 = arith.constant 0 : index
    %c0_20 = arith.constant 0 : index
    %26 = vector.load %arg7[%c0_19, %c0_20] : memref<8x128xf32, #tpu.memory_space<vmem>>, vector<8x128xf32>
    tpu.vector_store %arg7[%c0_19, %c0_20], %25 {strides = array<i32>} : memref<8x128xf32, #tpu.memory_space<vmem>>, vector<8x128xf32>,
    return
  }
  func.func @transform_0(%arg0: i32, %arg1: i32, %arg2: i32) -> (i32, i32) {
    %c1_i32 = arith.constant 1 : i32
    %0 = arith.muli %arg1, %c1_i32 : i32
    %1 = arith.addi %0, %arg2 : i32
    %c0_i32 = arith.constant 0 : i32
    return %arg0, %1 : i32, i32
  }
  func.func @transform_1(%arg0: i32, %arg1: i32, %arg2: i32) -> (i32, i32) {
    %c1_i32 = arith.constant 1 : i32
    %0 = arith.muli %arg1, %c1_i32 : i32
    %1 = arith.addi %0, %arg2 : i32
    %c0_i32 = arith.constant 0 : i32
    return %arg0, %1 : i32, i32
  }
  func.func @transform_2(%arg0: i32, %arg1: i32, %arg2: i32) -> (i32, i32) {
    %c0_i32 = arith.constant 0 : i32
    return %arg0, %arg1 : i32, i32
  }
  func.func @transform_3(%arg0: i32, %arg1: i32, %arg2: i32) -> (i32, i32) {
    %c0_i32 = arith.constant 0 : i32
    return %arg0, %arg1 : i32, i32
  }
  func.func @transform_4(%arg0: i32, %arg1: i32, %arg2: i32) -> (i32, i32) {
    %c0_i32 = arith.constant 0 : i32
    return %arg0, %arg1 : i32, i32
  }
}

</mosaic_0001>

<llo_original>
// kernel: tpu_custom_call.1
$region0: #{tpu_custom_call.1}
  #allocation0 [shape = 'u32[]', space=smem, size = 0x4, offset = 0x4, fixed_abs, tag = 'smem constant byte address 0x4 - core index']
  #allocation1 [shape = 'u32[144,128]{1,0:T(1,128)}', space=vmem, size = 0x12000, scoped, tag = 'internal scratch']
  %s0 = inlined_call_operand.hbm [shape: f32[8,256], index: 0, kind: input, shape index: {}]
  %s1 = inlined_call_operand.hbm [shape: f32[8,256], index: 1, kind: input, shape index: {}]
  %s2 = inlined_call_operand.hbm [shape: f32[8,128], index: 2, kind: output, shape index: {0}]
  %s3 = inlined_call_operand.hbm [shape: f32[8,128], index: 3, kind: output, shape index: {1}]
  %s4 = inlined_call_operand.hbm [shape: f32[8,128], index: 4, kind: output, shape index: {2}]
  %5 = xla_tuple %s2, %s3, %s4
  %s6 = sld [smem:[#allocation0]]
  $region46: #{tpu_custom_call.1} parent=0
    _
  %s8 = ssub.s32 1, %s6
  %s9 = scalar_select 0, %s8, %s6
  $region1: #{tpu_custom_call.1} parent=0
    #allocation2 [shape = 'u8[8192]{0}', space=vmem, size = 0x2000, scoped, tag = 'input window, operand 0, single buffered']
    #allocation3 [shape = 's32[1]{0}', space=sflag, size = 0x4, scoped, tag = 'scoped memory for tpu_custom_call.1']
    #allocation4 [shape = 's32[1]{0}', space=sflag, size = 0x4, scoped, tag = 'scoped memory for tpu_custom_call.1']
    #allocation5 [shape = 'u8[8192]{0}', space=vmem, size = 0x2000, scoped, tag = 'input window, operand 1, single buffered']
    #allocation6 [shape = 's32[1]{0}', space=sflag, size = 0x4, scoped, tag = 'scoped memory for tpu_custom_call.1']
    #allocation7 [shape = 'u8[4096]{0}', space=vmem, size = 0x1000, scoped, tag = 'output window, operand 0, single buffered']
    #allocation8 [shape = 'u8[4096]{0}', space=vmem, size = 0x1000, scoped, tag = 'output window, operand 1, single buffered']
    #allocation9 [shape = 's32[1]{0}', space=sflag, size = 0x4, scoped, tag = 'scoped memory for tpu_custom_call.1']
    #allocation10 [shape = 'u8[4096]{0}', space=vmem, size = 0x1000, scoped, tag = 'output window, operand 2, single buffered']
    %10 = vsyncpa [#allocation3], 0
    %11 = vsyncpa [#allocation6], 0
    %12 = vsyncpa [#allocation4], 0
    %13 = vsyncpa [#allocation9], 0
    // Predicated region
    $region2: #{tpu_custom_call.1} parent=1 // pred_check
      _
    $region3: #{tpu_custom_call.1} parent=1 // pred_check_branch
      %15 = sbr.rel (0) target = $region5
    $region4: #{tpu_custom_call.1} parent=1 // pred_region
      %s16 = sadd.s32 0, 0
      %s17 = smul.u32 2, %s16
      %s19 = ssub.s32 256, 256
      %20 = vsyncadd [#allocation3], %s19
      %s21 = smul.addr %s17, 128
      %s22 = scalar_lea.hbm %s0, %s21
      %s24 = sshll.u32 [#allocation2], 4
      %s25 = int_to_ptr.vmem [resolvable:$true] %s24
      %27 = dma.hbm_to_vmem [thread:$0]  %s22, 256, %s25, [#allocation3]
    $region5: #{tpu_custom_call.1} parent=1 // pred_fallthru
      _
    // Predicated region
    $region6: #{tpu_custom_call.1} parent=1 // pred_check
      _
    $region7: #{tpu_custom_call.1} parent=1 // pred_check_branch
      %29 = sbr.rel (0) target = $region9
    $region8: #{tpu_custom_call.1} parent=1 // pred_region
      %s30 = sadd.s32 0, 0
      %s31 = smul.u32 2, %s30
      %s33 = ssub.s32 256, 256
      %34 = vsyncadd [#allocation6], %s33
      %s35 = smul.addr %s31, 128
      %s36 = scalar_lea.hbm %s1, %s35
      %s38 = sshll.u32 [#allocation5], 4
      %s39 = int_to_ptr.vmem [resolvable:$true] %s38
      %41 = dma.hbm_to_vmem [thread:$0]  %s36, 256, %s39, [#allocation6]
    $region9: #{tpu_custom_call.1} parent=1 // pred_fallthru
      _
    // Predicated region
    $region10: #{tpu_custom_call.1} parent=1 // pred_check
      _
    $region11: #{tpu_custom_call.1} parent=1 // pred_check_branch
      %43 = sbr.rel (0) target = $region13
    $region12: #{tpu_custom_call.1} parent=1 // pred_region
      %44 = dma.done [#allocation3], 256
    $region13: #{tpu_custom_call.1} parent=1 // pred_fallthru
      _
    // Predicated region
    $region14: #{tpu_custom_call.1} parent=1 // pred_check
      _
    $region15: #{tpu_custom_call.1} parent=1 // pred_check_branch
      %46 = sbr.rel (0) target = $region17
    $region16: #{tpu_custom_call.1} parent=1 // pred_region
      %47 = dma.done [#allocation6], 256
    $region17: #{tpu_custom_call.1} parent=1 // pred_fallthru
      _
    %s48 = sadd.s32 0, 0
    %s49 = smul.u32 2, %s48
    %s50 = sadd.s32 0, 0
    %s51 = smul.u32 2, %s50
    %p52 = scmp.eq.s32.totalorder 0, 0
    // Predicated region
    $region18: #{tpu_custom_call.1} parent=1 // pred_check
      %p53 = pneg %p52
    $region19: #{tpu_custom_call.1} parent=1 // pred_check_branch
      %55 = sbr.rel (%p53) target = $region21
    $region20: #{tpu_custom_call.1} parent=1 // pred_region
      %56 = vst [vmem:[#allocation7] sm:$0xff] 0.0
      %57 = vst [vmem:[#allocation8] sm:$0xff] 0.0
      %58 = vst [vmem:[#allocation10] sm:$0xff] 0.0
    $region21: #{tpu_custom_call.1} parent=1 // pred_fallthru
      _
    %v59 = vld [vmem:[#allocation2] sm:$0xff]
    %v60 = vld [vmem:[#allocation5] sm:$0xff]
    %v61 = vmul.f32 %v59, %v60
    %v62 = vadd.f32 %v61, 0.0
    %v63 = vadd.f32 %v59, 0.0
    %v64 = vadd.f32 %v60, 0.0
    %v65 = vld [vmem:[#allocation2 + $0x8] sm:$0xff]
    %v66 = vld [vmem:[#allocation5 + $0x8] sm:$0xff]
    %v67 = vmul.f32 %v65, %v66
    %v68 = vadd.f32 %v62, %v67
    %v69 = vadd.f32 %v63, %v65
    %v70 = vadd.f32 %v64, %v66
    %v71 = vld [vmem:[#allocation7] sm:$0xff]
    %v72 = vadd.f32 %v71, %v68
    %73 = vst [vmem:[#allocation7] sm:$0xff] %v72
    %v74 = vld [vmem:[#allocation8] sm:$0xff]
    %v75 = vadd.f32 %v74, %v69
    %76 = vst [vmem:[#allocation8] sm:$0xff] %v75
    %v77 = vld [vmem:[#allocation10] sm:$0xff]
    %v78 = vadd.f32 %v77, %v70
    %79 = vst [vmem:[#allocation10] sm:$0xff] %v78
    // Predicated region
    $region22: #{tpu_custom_call.1} parent=1 // pred_check
      _
    $region23: #{tpu_custom_call.1} parent=1 // pred_check_branch
      %81 = sbr.rel (0) target = $region25
    $region24: #{tpu_custom_call.1} parent=1 // pred_region
      %s83 = ssub.s32 128, 128
      %84 = vsyncadd [#allocation4], %s83
      %s86 = sshll.u32 [#allocation7], 4
      %s87 = int_to_ptr.vmem [resolvable:$true] %s86
      %89 = dma.vmem_to_hbm [thread:$0]  %s87, 128, %s2, [#allocation4]
    $region25: #{tpu_custom_call.1} parent=1 // pred_fallthru
      _
    // Predicated region
    $region26: #{tpu_custom_call.1} parent=1 // pred_check
      _
    $region27: #{tpu_custom_call.1} parent=1 // pred_check_branch
      %91 = sbr.rel (0) target = $region29
    $region28: #{tpu_custom_call.1} parent=1 // pred_region
      %s93 = ssub.s32 128, 128
      %94 = vsyncadd [#allocation9], %s93
      %s96 = sshll.u32 [#allocation8], 4
      %s97 = int_to_ptr.vmem [resolvable:$true] %s96
      %99 = dma.vmem_to_hbm [thread:$0]  %s97, 128, %s3, [#allocation9]
    $region29: #{tpu_custom_call.1} parent=1 // pred_fallthru
      _
    // Predicated region
    $region30: #{tpu_custom_call.1} parent=1 // pred_check
      _
    $region31: #{tpu_custom_call.1} parent=1 // pred_check_branch
      %101 = sbr.rel (0) target = $region33
    $region32: #{tpu_custom_call.1} parent=1 // pred_region
      %s103 = ssub.s32 128, 128
      %104 = vsyncadd [#allocation9], %s103
      %s106 = sshll.u32 [#allocation10], 4
      %s107 = int_to_ptr.vmem [resolvable:$true] %s106
      %109 = dma.vmem_to_hbm [thread:$0]  %s107, 128, %s4, [#allocation9]
    $region33: #{tpu_custom_call.1} parent=1 // pred_fallthru
      _
    // Predicated region
    $region34: #{tpu_custom_call.1} parent=1 // pred_check
      _
    $region35: #{tpu_custom_call.1} parent=1 // pred_check_branch
      %111 = sbr.rel (0) target = $region37
    $region36: #{tpu_custom_call.1} parent=1 // pred_region
      %112 = dma.done [#allocation4], 128
    $region37: #{tpu_custom_call.1} parent=1 // pred_fallthru
      _
    // Predicated region
    $region38: #{tpu_custom_call.1} parent=1 // pred_check
      _
    $region39: #{tpu_custom_call.1} parent=1 // pred_check_branch
      %114 = sbr.rel (0) target = $region41
    $region40: #{tpu_custom_call.1} parent=1 // pred_region
      %115 = dma.done [#allocation9], 128
    $region41: #{tpu_custom_call.1} parent=1 // pred_fallthru
      _
    // Predicated region
    $region42: #{tpu_custom_call.1} parent=1 // pred_check
      _
    $region43: #{tpu_custom_call.1} parent=1 // pred_check_branch
      %117 = sbr.rel (0) target = $region45
    $region44: #{tpu_custom_call.1} parent=1 // pred_region
      %118 = dma.done [#allocation9], 128
    $region45: #{tpu_custom_call.1} parent=1 // pred_fallthru
      _
    %119 = vsyncpa [#allocation3], 1
    %120 = vsyncpa [#allocation6], 1
    %121 = vsyncpa [#allocation4], 1
    %122 = vsyncpa [#allocation9], 1

</llo_original>
